<compile_context>
chip_gen: v5e
topology: v5e:2x2
jax: 0.10.0
libtpu: 0.0.40
codegen_flags: <defaults>
</compile_context>

<pallas_src>
import functools

import numpy as np
import jax
import jax.numpy as jnp
from jax import lax
from jax.experimental import pallas as pl
from jax.experimental.pallas import tpu as pltpu

F_HIDDEN = 128          # out_channels of every modifiedPNAConv
NUM_AGG = 4             # mean, min, max, std
NUM_SCALER = 3          # identity, amplification, attenuation
AGG_F = NUM_AGG * NUM_SCALER * F_HIDDEN   # 1536


def _round_up(v, m):
    return ((v + m - 1) // m) * m


def _full_spec(shape):
    nd = len(shape)
    return pl.BlockSpec(shape, lambda i, _nd=nd: (0,) * _nd)


# --------------------------------------------------------------------------
# Tiled matmul + bias (+ReLU)
# --------------------------------------------------------------------------
def _matmul_kernel(x_ref, w_ref, b_ref, o_ref, acc_ref, *, activation):
    @pl.when(pl.program_id(2) == 0)
    def _():
        acc_ref[...] = jnp.zeros_like(acc_ref)

    acc_ref[...] += jnp.dot(x_ref[...].astype(jnp.bfloat16), w_ref[...],
                            preferred_element_type=jnp.float32)

    @pl.when(pl.program_id(2) == pl.num_programs(2) - 1)
    def _():
        r = acc_ref[...] + b_ref[...]
        if activation == "relu":
            r = jnp.maximum(r, 0.0)
        o_ref[...] = r.astype(o_ref.dtype)


def matmul_bias(x, w, b, activation="none"):
    """(M,K)@(K,N)+b, bf16 MXU operands / f32 accumulation, tiled + pipelined."""
    M, K = x.shape
    N = w.shape[1]
    TM = 128 if M >= 128 else _round_up(M, 8)
    M_pad = _round_up(M, TM)
    K_pad = _round_up(K, 128)
    TK = K_pad if K_pad <= 1024 else 512
    K_pad = _round_up(K_pad, TK)
    N_pad = _round_up(N, 128)
    TN = 128

    xp = jnp.zeros((M_pad, K_pad), jnp.float32).at[:M, :K].set(
        x.astype(jnp.float32))
    wp = jnp.zeros((K_pad, N_pad), jnp.bfloat16).at[:K, :N].set(
        w.astype(jnp.bfloat16))
    bp = jnp.zeros((1, N_pad), jnp.float32).at[:, :N].set(
        b.reshape(1, N).astype(jnp.float32))

    grid = (M_pad // TM, N_pad // TN, K_pad // TK)
    out = pl.pallas_call(
        functools.partial(_matmul_kernel, activation=activation),
        out_shape=jax.ShapeDtypeStruct((M_pad, N_pad), jnp.float32),
        grid_spec=pltpu.PrefetchScalarGridSpec(
            num_scalar_prefetch=0,
            grid=grid,
            in_specs=[pl.BlockSpec((TM, TK), lambda i, j, k: (i, k)),
                      pl.BlockSpec((TK, TN), lambda i, j, k: (k, j)),
                      pl.BlockSpec((1, TN), lambda i, j, k: (0, j))],
            out_specs=pl.BlockSpec((TM, TN), lambda i, j, k: (i, j)),
            scratch_shapes=[pltpu.VMEM((TM, TN), jnp.float32)]),
        compiler_params=pltpu.CompilerParams(
            dimension_semantics=("parallel", "parallel", "arbitrary")),
    )(xp, wp, bp)
    return out[:M, :N]


# --------------------------------------------------------------------------
# Per-edge message (edge encoder folded into the pre-NN weight)
# --------------------------------------------------------------------------
def _edge_message_kernel(xi_ref, xj_ref, e3_ref, ew_ref, w1_ref, w2_ref,
                         wf_ref, bf_ref, bpre_ref, o_ref):
    # h = cat([ew*x_i, ew*x_j, ew*(e3@We+be)]) @ Wpre + bpre
    #   = ew * (x_i@W1 + x_j@W2 + e3@Wf + bf) + bpre
    acc = jnp.dot(xi_ref[...].astype(jnp.bfloat16), w1_ref[...],
                  preferred_element_type=jnp.float32)
    acc = acc + jnp.dot(xj_ref[...].astype(jnp.bfloat16), w2_ref[...],
                        preferred_element_type=jnp.float32)
    e3 = e3_ref[...]
    wf = wf_ref[...]
    # K=3 matmul done as three VPU broadcast-FMAs (MXU would be >95% idle).
    acc = acc + (e3[:, 0:1] * wf[0:1, :] + e3[:, 1:2] * wf[1:2, :]
                 + e3[:, 2:3] * wf[2:3, :])
    acc = acc + bf_ref[...]
    o_ref[...] = ew_ref[...] * acc + bpre_ref[...]


def edge_message(x_i, x_j, e3, ew, w1, w2, wf, bf, b_pre, edge_block):
    E_pad, F = x_i.shape
    TE = edge_block
    const = lambda i: (0, 0)
    return pl.pallas_call(
        _edge_message_kernel,
        out_shape=jax.ShapeDtypeStruct((E_pad, F), jnp.float32),
        grid_spec=pltpu.PrefetchScalarGridSpec(
            num_scalar_prefetch=0,
            grid=(E_pad // TE,),
            in_specs=[pl.BlockSpec((TE, F), lambda i: (i, 0)),
                      pl.BlockSpec((TE, F), lambda i: (i, 0)),
                      pl.BlockSpec((TE, 3), lambda i: (i, 0)),
                      pl.BlockSpec((TE, 1), lambda i: (i, 0)),
                      pl.BlockSpec((F, F), const),
                      pl.BlockSpec((F, F), const),
                      pl.BlockSpec((3, F), const),
                      pl.BlockSpec((1, F), const),
                      pl.BlockSpec((1, F), const)],
            out_specs=pl.BlockSpec((TE, F), lambda i: (i, 0))),
        compiler_params=pltpu.CompilerParams(
            dimension_semantics=("parallel",)),
    )(x_i, x_j, e3, ew, w1, w2, wf, bf, b_pre)


# --------------------------------------------------------------------------
# PNA aggregation: one-hot MXU for mean/std/count, sorted CSR loops for min/max
# --------------------------------------------------------------------------
def _pna_agg_kernel(row_off_ref, dst_ref, msg_ref, o_ref,
                    s_acc, ssq_acc, cnt_acc, min_acc, max_acc,
                    *, avg_log, block_nodes, edge_block):
    P, EB = block_nodes, edge_block
    i = pl.program_id(0)
    j = pl.program_id(1)
    base = i * P

    @pl.when(j == 0)
    def _():
        s_acc[...] = jnp.zeros_like(s_acc)
        ssq_acc[...] = jnp.zeros_like(ssq_acc)
        cnt_acc[...] = jnp.zeros_like(cnt_acc)
        min_acc[...] = jnp.full_like(min_acc, jnp.inf)
        max_acc[...] = jnp.full_like(max_acc, -jnp.inf)

    eb0 = j * EB
    lo = jnp.maximum(row_off_ref[base], eb0)
    hi = jnp.minimum(row_off_ref[base + P], eb0 + EB)

    @pl.when(hi > lo)       # skip (node-block, edge-block) pairs with no edges
    def _():
        dst_blk = dst_ref[...]                                   # (1, EB) int32
        node_ids = base + lax.broadcasted_iota(jnp.int32, (P, 1), 0)
        onehot = (dst_blk == node_ids).astype(jnp.float32)       # (P, EB)
        msg = msg_ref[...]                                       # (EB, F) f32
        s_acc[...] += jnp.dot(onehot, msg, preferred_element_type=jnp.float32)
        ssq_acc[...] += jnp.dot(onehot, msg * msg,
                                preferred_element_type=jnp.float32)
        cnt_acc[...] += jnp.sum(onehot, axis=1, keepdims=True)

        # min/max: edges are sorted by dst, so each node owns a contiguous edge
        # segment -> O(E) total scalar work across the whole grid.
        def node_body(r, carry):
            n = base + r
            e_lo = jnp.maximum(row_off_ref[n], eb0) - eb0
            e_hi = jnp.minimum(row_off_ref[n + 1], eb0 + EB) - eb0

            def edge_body(e, c):
                row = msg_ref[pl.ds(e, 1), :]
                min_acc[pl.ds(r, 1), :] = jnp.minimum(min_acc[pl.ds(r, 1), :],
                                                      row)
                max_acc[pl.ds(r, 1), :] = jnp.maximum(max_acc[pl.ds(r, 1), :],
                                                      row)
                return c
            return lax.fori_loop(e_lo, e_hi, edge_body, carry)
        lax.fori_loop(0, P, node_body, 0)

    @pl.when(j == pl.num_programs(1) - 1)
    def _():
        cnt = cnt_acc[...]                                       # (P, 1)
        deg = jnp.maximum(cnt, 1.0)                              # degree.clamp_(1)
        mean = s_acc[...] / deg
        var = ssq_acc[...] / deg - mean * mean
        std = jnp.sqrt(jnp.maximum(var, 0.0) + 1e-5)
        has = cnt > 0.0
        mn = jnp.where(has, min_acc[...], 0.0)
        mx = jnp.where(has, max_acc[...], 0.0)
        logd = jnp.log(deg + 1.0)
        amp = logd * (1.0 / avg_log)
        att = avg_log / logd
        # aggregator order [mean, min, max, std]; scalers identity/amp/att.
        # The reference updates `out` in place, so attenuation is applied to the
        # *amplified* value.
        base_cat = jnp.concatenate([mean, mn, mx, std], axis=1)   # (P, 4F)
        amp_cat = base_cat * amp
        att_cat = amp_cat * att
        # single dense lane-aligned store of the full (P, 12F) block
        o_ref[...] = jnp.concatenate([base_cat, amp_cat, att_cat], axis=1)


def pna_aggregate(msg, dst_row, row_off, n_pad, block_nodes, edge_block,
                  avg_log):
    E_pad, F = msg.shape
    P, EB = block_nodes, edge_block
    kern = functools.partial(_pna_agg_kernel, avg_log=avg_log,
                             block_nodes=P, edge_block=EB)
    return pl.pallas_call(
        kern,
        out_shape=jax.ShapeDtypeStruct((n_pad, AGG_F), jnp.float32),
        grid_spec=pltpu.PrefetchScalarGridSpec(
            num_scalar_prefetch=1,                 # CSR row offsets in SMEM
            grid=(n_pad // P, E_pad // EB),
            in_specs=[pl.BlockSpec((1, EB), lambda i, j, ro: (0, j)),
                      pl.BlockSpec((EB, F), lambda i, j, ro: (j, 0))],
            out_specs=pl.BlockSpec((P, AGG_F), lambda i, j, ro: (i, 0)),
            scratch_shapes=[pltpu.VMEM((P, F), jnp.float32),     # sum
                            pltpu.VMEM((P, F), jnp.float32),     # sum of squares
                            pltpu.VMEM((P, 1), jnp.float32),     # count
                            pltpu.VMEM((P, F), jnp.float32),     # min
                            pltpu.VMEM((P, F), jnp.float32)]),   # max
        compiler_params=pltpu.CompilerParams(
            dimension_semantics=("parallel", "arbitrary"),
            vmem_limit_bytes=64 * 1024 * 1024),
    )(row_off, dst_row, msg)


# --------------------------------------------------------------------------
# Fused post-NN (split weights, no [m, agg] concat) + GRU cell + BN + ReLU
# --------------------------------------------------------------------------
def _combine_kernel(m_ref, agg_ref, x_ref, wpm_ref, wpa_ref, bp_ref,
                    wih_ref, bih_ref, whh_ref, bhh_ref, bns_ref, bnt_ref,
                    o_ref):
    F = x_ref.shape[1]
    post = jnp.dot(m_ref[...].astype(jnp.bfloat16), wpm_ref[...],
                   preferred_element_type=jnp.float32)
    post = post + jnp.dot(agg_ref[...].astype(jnp.bfloat16), wpa_ref[...],
                          preferred_element_type=jnp.float32)
    post = post + bp_ref[...]
    gi = jnp.dot(post.astype(jnp.bfloat16), wih_ref[...],
                 preferred_element_type=jnp.float32) + bih_ref[...]
    x = x_ref[...]
    gh = jnp.dot(x.astype(jnp.bfloat16), whh_ref[...],
                 preferred_element_type=jnp.float32) + bhh_ref[...]
    r = jax.nn.sigmoid(gi[:, 0:F] + gh[:, 0:F])
    z = jax.nn.sigmoid(gi[:, F:2 * F] + gh[:, F:2 * F])
    n = jnp.tanh(gi[:, 2 * F:3 * F] + r * gh[:, 2 * F:3 * F])
    h = (1.0 - z) * n + z * x
    o_ref[...] = jnp.maximum(h * bns_ref[...] + bnt_ref[...], 0.0)


def combine_update(m, agg, x, p, bn_scale, bn_shift, block_nodes):
    Np, F = x.shape
    AF = agg.shape[1]
    TMn = block_nodes
    wpm = p["w_post"][:F].astype(jnp.bfloat16)
    wpa = p["w_post"][F:].astype(jnp.bfloat16)
    const = lambda i: (0, 0)
    return pl.pallas_call(
        _combine_kernel,
        out_shape=jax.ShapeDtypeStruct((Np, F), jnp.float32),
        grid_spec=pltpu.PrefetchScalarGridSpec(
            num_scalar_prefetch=0,
            grid=(Np // TMn,),
            in_specs=[pl.BlockSpec((TMn, F), lambda i: (i, 0)),
                      pl.BlockSpec((TMn, AF), lambda i: (i, 0)),
                      pl.BlockSpec((TMn, F), lambda i: (i, 0)),
                      pl.BlockSpec((F, F), const),
                      pl.BlockSpec((AF, F), const),
                      pl.BlockSpec((1, F), const),
                      pl.BlockSpec((F, 3 * F), const),
                      pl.BlockSpec((1, 3 * F), const),
                      pl.BlockSpec((F, 3 * F), const),
                      pl.BlockSpec((1, 3 * F), const),
                      pl.BlockSpec((1, F), const),
                      pl.BlockSpec((1, F), const)],
            out_specs=pl.BlockSpec((TMn, F), lambda i: (i, 0))),
        compiler_params=pltpu.CompilerParams(
            dimension_semantics=("parallel",),
            vmem_limit_bytes=64 * 1024 * 1024),
    )(m, agg, x,
      wpm, wpa, p["b_post"].reshape(1, F).astype(jnp.float32),
      p["w_ih"].astype(jnp.bfloat16), p["b_ih"].reshape(1, 3 * F),
      p["w_hh"].astype(jnp.bfloat16), p["b_hh"].reshape(1, 3 * F),
      bn_scale.reshape(1, F), bn_shift.reshape(1, F))


# --------------------------------------------------------------------------
# Global max + mean pooling per graph
# --------------------------------------------------------------------------
def _pool_kernel(brow_ref, bcol_ref, x_ref, o_ref, *, num_graphs, feat):
    F = feat
    x = x_ref[...]
    brow = brow_ref[...]                                  # (1, N_pad)
    bcol = bcol_ref[...]                                  # (N_pad, 1)
    B_pad = o_ref.shape[0]
    gids = lax.broadcasted_iota(jnp.int32, (B_pad, 1), 0)
    onehot = (brow == gids).astype(jnp.float32)           # (B_pad, N_pad)
    cnt = jnp.sum(onehot, axis=1, keepdims=True)
    mean = jnp.dot(onehot, x, preferred_element_type=jnp.float32) \
        / jnp.maximum(cnt, 1.0)
    rows = []
    for g in range(num_graphs):
        mask = bcol == g
        rows.append(jnp.max(jnp.where(mask, x, -jnp.inf), axis=0,
                            keepdims=True))
    for _ in range(B_pad - num_graphs):
        rows.append(jnp.zeros((1, F), jnp.float32))
    mx = jnp.where(cnt > 0.0, jnp.concatenate(rows, axis=0), 0.0)
    o_ref[...] = jnp.concatenate([mx, mean], axis=1)      # single dense store


def global_pool(x, batch_row, batch_col, num_graphs):
    Np, F = x.shape
    B_pad = _round_up(max(num_graphs, 1), 8)
    kern = functools.partial(_pool_kernel, num_graphs=num_graphs, feat=F)
    out = pl.pallas_call(
        kern,
        out_shape=jax.ShapeDtypeStruct((B_pad, 2 * F), jnp.float32),
        grid=(1,),
        in_specs=[_full_spec((1, Np)), _full_spec((Np, 1)),
                  _full_spec((Np, F))],
        out_specs=_full_spec((B_pad, 2 * F)),
    )(batch_row, batch_col, x)
    return out[:num_graphs]


# --------------------------------------------------------------------------
# modifiedPNAConv (gated path, towers=1, divide_input=False, edge_dim=3)
# --------------------------------------------------------------------------
def pna_conv(x, p, bn_scale, bn_shift, meta):
    Np = x.shape[0]
    F = F_HIDDEN
    if x.shape[-1] < F:
        x = jnp.concatenate(
            [x, jnp.zeros((Np, F - x.shape[-1]), x.dtype)], axis=-1)
    # m = x @ weight[0]
    m = matmul_bias(x, p["w_gate"], p["zero_bias"])
    # gather endpoints (plain-JAX glue).
    # TODO(synk): could be moved in-kernel with scalar-prefetched row gathers.
    x_j = jnp.take(m, meta["src_gather"], axis=0)
    x_i = jnp.take(m, meta["dst_gather"], axis=0)
    # fold edge_encoder (Linear(3,128)) into the pre-NN weight
    w1 = p["w_pre"][:F].astype(jnp.bfloat16)
    w2 = p["w_pre"][F:2 * F].astype(jnp.bfloat16)
    w3 = p["w_pre"][2 * F:]
    wf = jnp.dot(p["w_edge"], w3)                         # (3, F)
    bf = jnp.dot(p["b_edge"].reshape(1, F), w3)           # (1, F)
    msg = edge_message(x_i, x_j, meta["e3"], meta["ew"], w1, w2, wf, bf,
                       p["b_pre"].reshape(1, F), meta["edge_block"])
    agg = pna_aggregate(msg, meta["dst_row"], meta["row_off"], Np,
                        meta["node_block"], meta["edge_block"],
                        meta["avg_log"])
    # post_nn(m || agg) + GRUCell + BatchNorm(eval) + ReLU, fused
    return combine_update(m, agg, x, p, bn_scale, bn_shift,
                          meta["node_block"])


# --------------------------------------------------------------------------
# modifiedPNAnet forward (eval mode: Dropout layers skipped)
# --------------------------------------------------------------------------
def pna_net_forward(params, x, edge_index, edge_attr, intarna_energy, batch,
                    covalent_edges, num_graphs, avg_log):
    del intarna_energy  # unused by the reference forward
    N = x.shape[0]
    # covalent / non-covalent split + recombination.
    # TODO(synk): dropout_adj(p, force_undirected=True) is stochastic edge
    # dropout; omitted here (equivalent to p=0 keep-all; aggregation is
    # permutation-invariant in edge order).
    ei_cov = edge_index[:, covalent_edges]
    ei_non = edge_index[:, ~covalent_edges]
    ea_cov = edge_attr[covalent_edges]
    ea_non = edge_attr[~covalent_edges]
    edge_index = jnp.concatenate([ei_cov, ei_non], axis=-1)
    edge_attr = jnp.concatenate([ea_cov, ea_non], axis=0)
    src = edge_index[0].astype(jnp.int32)
    dst = edge_index[1].astype(jnp.int32)
    E = int(src.shape[0])

    # static tiling decisions
    P = 128 if N >= 128 else _round_up(N, 8)          # nodes per agg block
    N_pad = _round_up(N, P)
    if E >= 512:
        EB = 512
        E_pad = _round_up(E, EB)
    else:
        EB = _round_up(E, 8)
        E_pad = EB

    # sort edges by destination -> CSR row offsets (scalar-prefetched)
    order = jnp.argsort(dst)
    src_s = src[order]
    dst_s = dst[order]
    ea_s = edge_attr[order]
    pad_e = E_pad - E
    src_p = jnp.concatenate([src_s, jnp.zeros((pad_e,), jnp.int32)])
    dst_p = jnp.concatenate([dst_s, jnp.full((pad_e,), N_pad, jnp.int32)])
    ea_p = jnp.concatenate(
        [ea_s, jnp.zeros((pad_e, ea_s.shape[1]), ea_s.dtype)], axis=0)
    row_off = jnp.searchsorted(
        dst_p, jnp.arange(N_pad + 1, dtype=jnp.int32)).astype(jnp.int32)

    meta = dict(
        node_block=P, edge_block=EB, avg_log=avg_log,
        src_gather=src_p,
        dst_gather=jnp.minimum(dst_p, N_pad - 1),
        dst_row=dst_p.reshape(1, E_pad),
        row_off=row_off,
        e3=ea_p[:, :3].astype(jnp.float32),
        ew=ea_p[:, 3:4].astype(jnp.float32),
    )

    h = jnp.zeros((N_pad, x.shape[1]), jnp.float32).at[:N].set(
        x.astype(jnp.float32))
    for l in range(1, 5):
        h = pna_conv(h, params[f"conv{l}"], params[f"bn{l}_scale"],
                     params[f"bn{l}_shift"], meta)

    batch_p = jnp.full((N_pad,), num_graphs, jnp.int32).at[:N].set(
        batch.astype(jnp.int32))
    pooled = global_pool(h, batch_p.reshape(1, N_pad),
                         batch_p.reshape(N_pad, 1), num_graphs)   # (B, 256)
    y = matmul_bias(pooled, params["lin1_w"], params["lin1_b"],
                    activation="relu")
    y = matmul_bias(y, params["lin2_w"], params["lin2_b"], activation="relu")
    return matmul_bias(y, params["lin3_w"], params["lin3_b"])


# --------------------------------------------------------------------------
# deterministic parameter initialization
# --------------------------------------------------------------------------
def _init_linear(kw, kb, fi, fo):
    w = jax.random.normal(kw, (fi, fo), jnp.float32) / np.sqrt(fi)
    b = jax.random.normal(kb, (fo,), jnp.float32) * 0.01
    return w, b


def init_conv_params(key):
    ks = jax.random.split(key, 11)
    w_gate = jax.random.normal(ks[0], (F_HIDDEN, F_HIDDEN),
                               jnp.float32) / np.sqrt(F_HIDDEN)
    w_edge, b_edge = _init_linear(ks[1], ks[2], 3, F_HIDDEN)
    w_pre, b_pre = _init_linear(ks[3], ks[4], 3 * F_HIDDEN, F_HIDDEN)
    w_post, b_post = _init_linear(ks[5], ks[6],
                                  (NUM_AGG * NUM_SCALER + 1) * F_HIDDEN,
                                  F_HIDDEN)
    w_ih, b_ih = _init_linear(ks[7], ks[8], F_HIDDEN, 3 * F_HIDDEN)
    w_hh, b_hh = _init_linear(ks[9], ks[10], F_HIDDEN, 3 * F_HIDDEN)
    return dict(w_gate=w_gate, zero_bias=jnp.zeros((F_HIDDEN,), jnp.float32),
                w_edge=w_edge, b_edge=b_edge, w_pre=w_pre, b_pre=b_pre,
                w_post=w_post, b_post=b_post,
                w_ih=w_ih, b_ih=b_ih, w_hh=w_hh, b_hh=b_hh)


def init_params(key):
    keys = jax.random.split(key, 16)
    params = {}
    eps = 1e-5
    for l in range(1, 5):
        params[f"conv{l}"] = init_conv_params(keys[l - 1])
        kg, kb = jax.random.split(keys[3 + l])
        gamma = 1.0 + 0.1 * jax.random.normal(kg, (F_HIDDEN,), jnp.float32)
        beta = 0.1 * jax.random.normal(kb, (F_HIDDEN,), jnp.float32)
        # eval-mode BatchNorm with default running stats (mean=0, var=1)
        params[f"bn{l}_scale"] = gamma / np.sqrt(1.0 + eps)
        params[f"bn{l}_shift"] = beta
    params["lin1_w"], params["lin1_b"] = _init_linear(keys[8], keys[9],
                                                      2 * F_HIDDEN, F_HIDDEN)
    params["lin2_w"], params["lin2_b"] = _init_linear(keys[10], keys[11],
                                                      F_HIDDEN, 64)
    params["lin3_w"], params["lin3_b"] = _init_linear(keys[12], keys[13],
                                                      64, 2)
    return params


# --------------------------------------------------------------------------
if __name__ == "__main__":
    key = jax.random.PRNGKey(0)
    k_param, k_x, k_e, k_w = jax.random.split(key, 4)

    NUM_NODE_FEATURES = 4
    N = 16                      # nodes (two graphs of 8)
    B = 2                       # graphs

    # small deterministic graph: per-graph chain (covalent, both directions)
    # plus a few long-range (non-covalent) edges.
    src_list, dst_list, cov_list = [], [], []
    for g in range(B):
        o = 8 * g
        for i in range(7):                         # covalent chain
            src_list += [o + i, o + i + 1]
            dst_list += [o + i + 1, o + i]
            cov_list += [True, True]
    for g in range(B):
        o = 8 * g
        for (a, b_) in [(0, 4), (1, 5), (2, 6)]:   # non-covalent contacts
            src_list += [o + a, o + b_]
            dst_list += [o + b_, o + a]
            cov_list += [False, False]
    edge_index = jnp.array([src_list, dst_list], dtype=jnp.int32)   # (2, 40)
    covalent_edges = jnp.array(cov_list, dtype=bool)                # (40,)
    E = edge_index.shape[1]

    x = jax.random.normal(k_x, (N, NUM_NODE_FEATURES), jnp.float32)
    edge_feat = jax.random.normal(k_e, (E, 3), jnp.float32)
    edge_w = 0.5 + jax.random.uniform(k_w, (E, 1), jnp.float32)     # positive
    edge_attr = jnp.concatenate([edge_feat, edge_w], axis=-1)       # (E, 4)
    batch = jnp.array([0] * 8 + [1] * 8, dtype=jnp.int32)
    intarna_energy = jnp.zeros((B,), jnp.float32)                   # unused

    # degree histogram; avg_deg['log'] = mean of log(deg + 1) over the tensor
    deg_hist = np.array([0.0, 2.0, 8.0, 6.0], dtype=np.float32)
    avg_log = float(np.mean(np.log(deg_hist + 1.0)))

    params = init_params(k_param)

    out = pna_net_forward(params, x, edge_index, edge_attr, intarna_energy,
                          batch, covalent_edges, num_graphs=B,
                          avg_log=avg_log)
    out = jax.block_until_ready(out)
    assert out.shape == (B, 2)
    assert bool(jnp.all(jnp.isfinite(out)))
    print("KERNEL_OK")
</pallas_src>

<mosaic_0001>
module attributes {stable_mosaic.version = 11 : i64} {
  func.func @_matmul_kernel(%arg0: i32, %arg1: i32, %arg2: i32, %arg3: memref<16x128xf32, #tpu.memory_space<vmem>>, %arg4: memref<128x128xbf16, #tpu.memory_space<vmem>>, %arg5: memref<1x128xf32, #tpu.memory_space<vmem>>, %arg6: memref<16x128xf32, #tpu.memory_space<vmem>>, %arg7: memref<16x128xf32, #tpu.memory_space<vmem>>) attributes {dimension_semantics = [#tpu.dimension_semantics<parallel>, #tpu.dimension_semantics<parallel>, #tpu.dimension_semantics<arbitrary>], iteration_bounds = array<i64: 1, 1, 1>, scalar_prefetch = 0 : i64, scratch_operands = 1 : i64, tpu.core_type = #tpu.core_type<tc>, window_params = [{transform_indices = @transform_0, window_bounds = array<i64: 16, 128>}, {transform_indices = @transform_1, window_bounds = array<i64: 128, 128>}, {transform_indices = @transform_2, window_bounds = array<i64: 1, 128>}, {transform_indices = @transform_3, window_bounds = array<i64: 16, 128>}]} {
    %c0_i32 = arith.constant 0 : i32
    %0 = arith.cmpi eq, %arg2, %c0_i32 : i32
    %1 = arith.extui %0 : i1 to i32
    %c0_i32_0 = arith.constant 0 : i32
    %2 = arith.cmpi ne, %1, %c0_i32_0 : i32
    scf.if %2 {
      %cst_10 = arith.constant 0.000000e+00 : f32
      %13 = vector.broadcast %cst_10 : f32 to vector<16x128xf32>
      %c0_11 = arith.constant 0 : index
      %c0_12 = arith.constant 0 : index
      %14 = vector.load %arg7[%c0_11, %c0_12] : memref<16x128xf32, #tpu.memory_space<vmem>>, vector<16x128xf32>
      tpu.vector_store %arg7[%c0_11, %c0_12], %13 {strides = array<i32>} : memref<16x128xf32, #tpu.memory_space<vmem>>, vector<16x128xf32>,
    } else {
    }
    %c0 = arith.constant 0 : index
    %c0_1 = arith.constant 0 : index
    %3 = vector.load %arg7[%c0, %c0_1] : memref<16x128xf32, #tpu.memory_space<vmem>>, vector<16x128xf32>
    %c0_2 = arith.constant 0 : index
    %c0_3 = arith.constant 0 : index
    %4 = vector.load %arg3[%c0_2, %c0_3] : memref<16x128xf32, #tpu.memory_space<vmem>>, vector<16x128xf32>
    %5 = arith.truncf %4 : vector<16x128xf32> to vector<16x128xbf16>
    %c0_4 = arith.constant 0 : index
    %c0_5 = arith.constant 0 : index
    %6 = vector.load %arg4[%c0_4, %c0_5] : memref<128x128xbf16, #tpu.memory_space<vmem>>, vector<128x128xbf16>
    %cst = arith.constant dense<0.000000e+00> : vector<16x128xf32>
    %7 = tpu.matmul %5, %6, %cst {dimension_numbers = #tpu.dot_dimension_numbers<[1], [0], [0], [1], [0, 0, 1, 1], [], []>} : vector<16x128xbf16>, vector<128x128xbf16>, vector<16x128xf32> -> vector<16x128xf32>
    %8 = arith.addf %3, %7 : vector<16x128xf32>
    %c0_6 = arith.constant 0 : index
    %c0_7 = arith.constant 0 : index
    %9 = vector.load %arg7[%c0_6, %c0_7] : memref<16x128xf32, #tpu.memory_space<vmem>>, vector<16x128xf32>
    tpu.vector_store %arg7[%c0_6, %c0_7], %8 {strides = array<i32>} : memref<16x128xf32, #tpu.memory_space<vmem>>, vector<16x128xf32>,
    %c0_i32_8 = arith.constant 0 : i32
    %10 = arith.cmpi eq, %arg2, %c0_i32_8 : i32
    %11 = arith.extui %10 : i1 to i32
    %c0_i32_9 = arith.constant 0 : i32
    %12 = arith.cmpi ne, %11, %c0_i32_9 : i32
    scf.if %12 {
      %c0_10 = arith.constant 0 : index
      %c0_11 = arith.constant 0 : index
      %13 = vector.load %arg7[%c0_10, %c0_11] : memref<16x128xf32, #tpu.memory_space<vmem>>, vector<16x128xf32>
      %c0_12 = arith.constant 0 : index
      %c0_13 = arith.constant 0 : index
      %14 = vector.load %arg5[%c0_12, %c0_13] : memref<1x128xf32, #tpu.memory_space<vmem>>, vector<1x128xf32>
      %15 = vector.broadcast %14 : vector<1x128xf32> to vector<16x128xf32>
      %16 = arith.addf %13, %15 : vector<16x128xf32>
      %c0_14 = arith.constant 0 : index
      %c0_15 = arith.constant 0 : index
      %17 = vector.load %arg6[%c0_14, %c0_15] : memref<16x128xf32, #tpu.memory_space<vmem>>, vector<16x128xf32>
      tpu.vector_store %arg6[%c0_14, %c0_15], %16 {strides = array<i32>} : memref<16x128xf32, #tpu.memory_space<vmem>>, vector<16x128xf32>,
    } else {
    }
    return
  }
  func.func @transform_0(%arg0: i32, %arg1: i32, %arg2: i32) -> (i32, i32) {
    %c0_i32 = arith.constant 0 : i32
    return %arg0, %arg2 : i32, i32
  }
  func.func @transform_1(%arg0: i32, %arg1: i32, %arg2: i32) -> (i32, i32) {
    %c0_i32 = arith.constant 0 : i32
    return %arg2, %arg1 : i32, i32
  }
  func.func @transform_2(%arg0: i32, %arg1: i32, %arg2: i32) -> (i32, i32) {
    %c0_i32 = arith.constant 0 : i32
    %c0_i32_0 = arith.constant 0 : i32
    return %c0_i32, %arg1 : i32, i32
  }
  func.func @transform_3(%arg0: i32, %arg1: i32, %arg2: i32) -> (i32, i32) {
    %c0_i32 = arith.constant 0 : i32
    return %arg0, %arg1 : i32, i32
  }
}

</mosaic_0001>

<llo_original>
// kernel: tpu_custom_call.1
$region0: #{tpu_custom_call.1}
  #allocation0 [shape = 'u32[]', space=smem, size = 0x4, offset = 0x4, fixed_abs, tag = 'smem constant byte address 0x4 - core index']
  #allocation1 [shape = 'u32[72,128]{1,0:T(1,128)}', space=vmem, size = 0x9000, scoped, tag = 'internal scratch']
  #allocation2 [shape = 'f32[16,128]{1,0:T(8,128)}', space=vmem, size = 0x2000, scoped, tag = 'scratch operand']
  %s0 = inlined_call_operand.hbm [shape: f32[16,128], index: 0, kind: input, shape index: {}]
  %s1 = inlined_call_operand.hbm [shape: bf16[128,128], index: 1, kind: input, shape index: {}]
  %s2 = inlined_call_operand.vmem [shape: f32[1,128], index: 2, kind: input, shape index: {}]
  %s3 = inlined_call_operand.hbm [shape: f32[16,128], index: 3, kind: output, shape index: {}]
  %s4 = sld [smem:[#allocation0]]
  $region38: #{tpu_custom_call.1} parent=0
    _
  %s6 = ssub.s32 1, %s4
  %s7 = scalar_select 0, %s6, %s4
  $region1: #{tpu_custom_call.1} parent=0
    #allocation3 [shape = 'u8[8192]{0}', space=vmem, size = 0x2000, scoped, tag = 'input window, operand 0, single buffered']
    #allocation4 [shape = 's32[1]{0}', space=sflag, size = 0x4, scoped, tag = 'scoped memory for tpu_custom_call.1']
    #allocation5 [shape = 's32[1]{0}', space=sflag, size = 0x4, scoped, tag = 'scoped memory for tpu_custom_call.1']
    #allocation6 [shape = 'u8[32768]{0}', space=vmem, size = 0x8000, scoped, tag = 'input window, operand 1, single buffered']
    #allocation7 [shape = 's32[1]{0}', space=sflag, size = 0x4, scoped, tag = 'scoped memory for tpu_custom_call.1']
    #allocation8 [shape = 'u8[8192]{0}', space=vmem, size = 0x2000, scoped, tag = 'output window, operand 0, single buffered']
    %8 = vsyncpa [#allocation4], 0
    %9 = vsyncpa [#allocation7], 0
    %10 = vsyncpa [#allocation5], 0
    // Predicated region
    $region2: #{tpu_custom_call.1} parent=1 // pred_check
      _
    $region3: #{tpu_custom_call.1} parent=1 // pred_check_branch
      %12 = sbr.rel (0) target = $region5
    $region4: #{tpu_custom_call.1} parent=1 // pred_region
      %14 = vsyncadd [#allocation4], 0
      %s15 = sshll.u32 %s0, 4
      %s16 = int_to_ptr.hbm [resolvable:$true] %s15
      %s17 = sshll.u32 [#allocation3], 4
      %s18 = int_to_ptr.vmem [resolvable:$true] %s17
      %23 = dma.hbm_to_vmem [thread:$0]  %s16, 256, %s18, [#allocation4], 128, 128, 8
    $region5: #{tpu_custom_call.1} parent=1 // pred_fallthru
      _
    // Predicated region
    $region6: #{tpu_custom_call.1} parent=1 // pred_check
      _
    $region7: #{tpu_custom_call.1} parent=1 // pred_check_branch
      %25 = sbr.rel (0) target = $region9
    $region8: #{tpu_custom_call.1} parent=1 // pred_region
      %27 = vsyncadd [#allocation7], 0
      %s28 = sshll.u32 %s1, 4
      %s29 = int_to_ptr.hbm [resolvable:$true] %s28
      %s30 = sshll.u32 [#allocation6], 4
      %s31 = int_to_ptr.vmem [resolvable:$true] %s30
      %36 = dma.hbm_to_vmem [thread:$0]  %s29, 1024, %s31, [#allocation7], 64, 64, 4
    $region9: #{tpu_custom_call.1} parent=1 // pred_fallthru
      _
    // Predicated region
    $region10: #{tpu_custom_call.1} parent=1 // pred_check
      _
    $region11: #{tpu_custom_call.1} parent=1 // pred_check_branch
      %38 = sbr.rel (0) target = $region13
    $region12: #{tpu_custom_call.1} parent=1 // pred_region
      _
    $region13: #{tpu_custom_call.1} parent=1 // pred_fallthru
      _
    // Predicated region
    $region14: #{tpu_custom_call.1} parent=1 // pred_check
      _
    $region15: #{tpu_custom_call.1} parent=1 // pred_check_branch
      %40 = sbr.rel (0) target = $region17
    $region16: #{tpu_custom_call.1} parent=1 // pred_region
      %42 = dma.done [#allocation4], 256
    $region17: #{tpu_custom_call.1} parent=1 // pred_fallthru
      _
    // Predicated region
    $region18: #{tpu_custom_call.1} parent=1 // pred_check
      _
    $region19: #{tpu_custom_call.1} parent=1 // pred_check_branch
      %44 = sbr.rel (0) target = $region21
    $region20: #{tpu_custom_call.1} parent=1 // pred_region
      %46 = dma.done [#allocation7], 1024
    $region21: #{tpu_custom_call.1} parent=1 // pred_fallthru
      _
    %p47 = scmp.eq.s32.totalorder 0, 0
    // Predicated region
    $region22: #{tpu_custom_call.1} parent=1 // pred_check
      %p48 = pneg %p47
    $region23: #{tpu_custom_call.1} parent=1 // pred_check_branch
      %50 = sbr.rel (%p48) target = $region25
    $region24: #{tpu_custom_call.1} parent=1 // pred_region
      %51 = vst [vmem:[#allocation2] sm:$0xff] 0.0
      %52 = vst [vmem:[#allocation2 + $0x8] sm:$0xff] 0.0
    $region25: #{tpu_custom_call.1} parent=1 // pred_fallthru
      _
    %v53 = vld [vmem:[#allocation2] sm:$0xff]
    %v54 = vld [vmem:[#allocation2 + $0x8] sm:$0xff]
    %v55 = vld [vmem:[#allocation3] sm:$0xff]
    %v56 = vld [vmem:[#allocation3 + $0x8] sm:$0xff]
    %v57 = vpack.c.bf16 %v56, %v55
    %v58 = vld [vmem:[#allocation6] sm:$0xf]
    %v59 = vld [vmem:[#allocation6 + $0x4] sm:$0xf]
    %v60 = vld [vmem:[#allocation6 + $0x8] sm:$0xf]
    %v61 = vld [vmem:[#allocation6 + $0xc] sm:$0xf]
    %v62 = vld [vmem:[#allocation6 + $0x10] sm:$0xf]
    %v63 = vld [vmem:[#allocation6 + $0x14] sm:$0xf]
    %v64 = vld [vmem:[#allocation6 + $0x18] sm:$0xf]
    %v65 = vld [vmem:[#allocation6 + $0x1c] sm:$0xf]
    %v66 = vld [vmem:[#allocation6 + $0x20] sm:$0xf]
    %v67 = vld [vmem:[#allocation6 + $0x24] sm:$0xf]
    %v68 = vld [vmem:[#allocation6 + $0x28] sm:$0xf]
    %v69 = vld [vmem:[#allocation6 + $0x2c] sm:$0xf]
    %v70 = vld [vmem:[#allocation6 + $0x30] sm:$0xf]
    %v71 = vld [vmem:[#allocation6 + $0x34] sm:$0xf]
    %v72 = vld [vmem:[#allocation6 + $0x38] sm:$0xf]
    %v73 = vld [vmem:[#allocation6 + $0x3c] sm:$0xf]
    %v90 = vunpack.c.l.b16 %v58
    %v91 = vunpack.c.l.b16 %v59
    %v92 = vunpack.c.l.b16 %v60
    %v93 = vunpack.c.l.b16 %v61
    %v94 = vunpack.c.l.b16 %v62
    %v95 = vunpack.c.l.b16 %v63
    %v96 = vunpack.c.l.b16 %v64
    %v97 = vunpack.c.l.b16 %v65
    %v98 = vunpack.c.l.b16 %v66
    %v99 = vunpack.c.l.b16 %v67
    %v100 = vunpack.c.l.b16 %v68
    %v101 = vunpack.c.l.b16 %v69
    %v102 = vunpack.c.l.b16 %v70
    %v103 = vunpack.c.l.b16 %v71
    %v104 = vunpack.c.l.b16 %v72
    %v105 = vunpack.c.l.b16 %v73
    %v106 = vpack.c.b16 %v91, %v90
    %v107 = vpack.c.b16 %v93, %v92
    %v108 = vpack.c.b16 %v95, %v94
    %v109 = vpack.c.b16 %v97, %v96
    %v110 = vpack.c.b16 %v99, %v98
    %v111 = vpack.c.b16 %v101, %v100
    %v112 = vpack.c.b16 %v103, %v102
    %v113 = vpack.c.b16 %v105, %v104
    %122 = vmatpush.bf16.msra.mxu0 %v113
    %123 = vmatpush.bf16.msra.mxu0 %v112
    %124 = vmatpush.bf16.msra.mxu0 %v111
    %125 = vmatpush.bf16.msra.mxu0 %v110
    %126 = vmatpush.bf16.msra.mxu0 %v109
    %127 = vmatpush.bf16.msra.mxu0 %v108
    %128 = vmatpush.bf16.msra.mxu0 %v107
    %129 = vmatpush.bf16.msra.mxu0 %v106
    %130 = vmatmul.bf16.gmra.mxu0 %v57
    %v131 = vpop.f32.mrf.mxu0
    %v132 = vadd.f32 0.0, %v131
    %v133 = vpop.f32.mrf.mxu0
    %v134 = vadd.f32 0.0, %v133
    %135 = vdwg.mxu0
    %v136 = vadd.f32 %v53, %v132
    %v137 = vadd.f32 %v54, %v134
    %138 = vst [vmem:[#allocation2] sm:$0xff] %v136
    %139 = vst [vmem:[#allocation2 + $0x8] sm:$0xff] %v137
    // Predicated region
    $region26: #{tpu_custom_call.1} parent=1 // pred_check
      %p140 = pneg %p47
    $region27: #{tpu_custom_call.1} parent=1 // pred_check_branch
      %142 = sbr.rel (%p140) target = $region29
    $region28: #{tpu_custom_call.1} parent=1 // pred_region
      %v143 = vld [vmem:[#allocation2] sm:$0xff]
      %v144 = vld [vmem:[#allocation2 + $0x8] sm:$0xff]
      %v145 = vld [vmem:[%s2] sm:$0x1]
      %v147 = vperm.slane %v145, 0
      %v149 = vadd.f32 %v143, %v147
      %v150 = vadd.f32 %v144, %v147
      %151 = vst [vmem:[#allocation8] sm:$0xff] %v149
      %152 = vst [vmem:[#allocation8 + $0x8] sm:$0xff] %v150
    $region29: #{tpu_custom_call.1} parent=1 // pred_fallthru
      _
    // Predicated region
    $region30: #{tpu_custom_call.1} parent=1 // pred_check
      _
    $region31: #{tpu_custom_call.1} parent=1 // pred_check_branch
      %154 = sbr.rel (0) target = $region33
    $region32: #{tpu_custom_call.1} parent=1 // pred_region
      %156 = vsyncadd [#allocation5], 0
      %s157 = sshll.u32 [#allocation8], 4
      %s158 = int_to_ptr.vmem [resolvable:$true] %s157
      %s159 = sshll.u32 %s3, 4
      %s160 = int_to_ptr.hbm [resolvable:$true] %s159
      %165 = dma.vmem_to_hbm [thread:$0]  %s158, 256, %s160, [#allocation5], 128, 128, 8
    $region33: #{tpu_custom_call.1} parent=1 // pred_fallthru
      _
    // Predicated region
    $region34: #{tpu_custom_call.1} parent=1 // pred_check
      _
    $region35: #{tpu_custom_call.1} parent=1 // pred_check_branch
      %167 = sbr.rel (0) target = $region37
    $region36: #{tpu_custom_call.1} parent=1 // pred_region
      %169 = dma.done [#allocation5], 256
    $region37: #{tpu_custom_call.1} parent=1 // pred_fallthru
      _
    %170 = vsyncpa [#allocation4], 1
    %171 = vsyncpa [#allocation7], 1
    %172 = vsyncpa [#allocation5], 1

</llo_original>
